<compile_context>
chip_gen: v5e
topology: v5e:2x2
jax: 0.10.0
libtpu: 0.0.40
codegen_flags: <defaults>
</compile_context>

<pallas_src>
import functools

import jax
import jax.numpy as jnp
from jax.experimental import pallas as pl
from jax.experimental.pallas import tpu as pltpu


# ---- graph config (mirrors EDGE_NODE_VALS['scene_graph'], the default branch
#      when config has no `graph_type` attribute) -----------------------------
EDGE_INDICES = [[0, 0], [1, 1], [2, 2], [0, 1], [0, 2]]
NODE_NUM = 3
EDGE_NUM = 2
E_TOTAL = len(EDGE_INDICES)  # 5


def _node_type_embedding_kernel(emb_ref, out_ref, slab_ref, *, node_num,
                                seq_len, e_total, d_model):
    # emb_ref  : (2, D)      embedding table in VMEM (constant index_map)
    # out_ref  : (BT, E*D)   flattened, lane-dense output block
    # slab_ref : (1, E*D)    scratch holding the batch-invariant row
    n_written = min(seq_len, e_total)
    n_node = min(node_num, n_written)

    # Build the flat slab with static slices only (no iota / vselect).
    # Rebuilt every grid step so it is valid on every TensorCore shard of the
    # "parallel" batch axis; cost is ~E tiny VMEM copies, hidden under the
    # output DMA.
    for r in range(n_node):
        slab_ref[:, r * d_model:(r + 1) * d_model] = emb_ref[0:1, :]
    for r in range(n_node, n_written):
        slab_ref[:, r * d_model:(r + 1) * d_model] = emb_ref[1:2, :]
    if n_written < e_total:
        slab_ref[:, n_written * d_model:] = jnp.zeros(
            (1, (e_total - n_written) * d_model), slab_ref.dtype)

    # Single dense store: sublane-broadcast the (1, E*D) slab over the batch
    # tile.  This is the only per-step work proportional to the output size.
    bt = out_ref.shape[0]
    out_ref[...] = jnp.broadcast_to(
        slab_ref[...], (bt, e_total * d_model)).astype(out_ref.dtype)


def _pick_batch_tile(bsize, flat_width, bytes_per_elem=4, vmem_budget=8 << 20):
    """Batch-tile rows per grid step.

    Small batches: one step writing the whole batch (block 2nd-to-last dim ==
    full array dim, so the (8,128) rule is satisfied).  Larger batches: a
    multiple of 8 (sublane-dense), capped so the double-buffered output block
    stays within a modest VMEM budget, and sized for >= 2 grid steps so v7x
    can shard the parallel axis across both TensorCores.
    """
    if bsize < 16:
        return bsize
    max_rows = max(8, vmem_budget // (2 * flat_width * bytes_per_elem))
    bt = min(bsize // 2, max_rows)
    bt = max(8, (bt // 8) * 8)
    return bt


def node_type_embedding(x, emb_table, *, node_num=NODE_NUM, e_total=E_TOTAL):
    """x: (B, S, ...) — only the shape is used.  emb_table: (2, D) float32.
    Returns (B, e_total, D) float32."""
    bsize = x.shape[0]
    seq_len = x.shape[1]
    assert seq_len <= e_total, "seq longer than E would OOB in the torch scatter"
    d_model = emb_table.shape[1]
    flat = e_total * d_model

    bt = _pick_batch_tile(bsize, flat)
    grid = (pl.cdiv(bsize, bt),)

    kernel = functools.partial(
        _node_type_embedding_kernel,
        node_num=node_num,
        seq_len=seq_len,
        e_total=e_total,
        d_model=d_model,
    )

    out_flat = pl.pallas_call(
        kernel,
        out_shape=jax.ShapeDtypeStruct((bsize, flat), jnp.float32),
        grid_spec=pltpu.PrefetchScalarGridSpec(
            num_scalar_prefetch=0,
            grid=grid,
            in_specs=[pl.BlockSpec((2, d_model), lambda b: (0, 0))],
            out_specs=pl.BlockSpec((bt, flat), lambda b: (b, 0)),
            scratch_shapes=[pltpu.VMEM((1, flat), jnp.float32)],
        ),
        compiler_params=pltpu.CompilerParams(
            dimension_semantics=("parallel",),
        ),
    )(emb_table)

    # Contiguous reshape back to (B, E, D) — layout plumbing outside the kernel.
    return out_flat.reshape(bsize, e_total, d_model)


def node_type_embedding_ref(x, emb_table, *, node_num=NODE_NUM, e_total=E_TOTAL):
    """Pure-JAX reference matching the PyTorch forward."""
    bsize, seq_len = x.shape[0], x.shape[1]
    d_model = emb_table.shape[1]
    idx = jnp.arange(e_total)
    type_idx = jnp.where(idx < node_num, 0, 1)
    rows = emb_table[type_idx]                               # (E, D)
    rows = jnp.where((idx < seq_len)[:, None], rows, 0.0)    # zero beyond seq
    return jnp.broadcast_to(rows[None], (bsize, e_total, d_model)).astype(jnp.float32)


if __name__ == "__main__":
    key = jax.random.PRNGKey(0)
    k_emb, k_x = jax.random.split(key)

    d_model = 32
    bsize = 2
    seq = NODE_NUM + EDGE_NUM  # 5 tokens actually written (== E here)

    # Deterministic parameter init (nn.Embedding(2, d_model) weight).
    emb_table = jax.random.normal(k_emb, (2, d_model), dtype=jnp.float32)

    # x: (B, S, D) — values unused, only shape drives the forward.
    x = jax.random.normal(k_x, (bsize, seq, d_model), dtype=jnp.float32)

    out = node_type_embedding(x, emb_table)
    out = jax.block_until_ready(out)

    expected = node_type_embedding_ref(x, emb_table)
    assert out.shape == (bsize, E_TOTAL, d_model), out.shape
    assert jnp.allclose(out, expected, atol=1e-6), "mismatch vs reference"

    print("KERNEL_OK")
</pallas_src>

<mosaic_0001>
module attributes {stable_mosaic.version = 11 : i64} {
  func.func @_node_type_embedding_kernel(%arg0: i32, %arg1: memref<2x32xf32, #tpu.memory_space<vmem>>, %arg2: memref<2x160xf32, #tpu.memory_space<vmem>>, %arg3: memref<1x160xf32, #tpu.memory_space<vmem>>) attributes {dimension_semantics = [#tpu.dimension_semantics<parallel>], iteration_bounds = array<i64: 1>, scalar_prefetch = 0 : i64, scratch_operands = 1 : i64, tpu.core_type = #tpu.core_type<tc>, window_params = [{pipeline_mode = #tpu.pipeline_mode<synchronous>, transform_indices = @transform_0, window_bounds = array<i64: 2, 32>}, {transform_indices = @transform_1, window_bounds = array<i64: 2, 160>}]} {
    %c0 = arith.constant 0 : index
    %c0_0 = arith.constant 0 : index
    %0 = vector.load %arg1[%c0, %c0_0] : memref<2x32xf32, #tpu.memory_space<vmem>>, vector<1x32xf32>
    %c0_1 = arith.constant 0 : index
    %c0_2 = arith.constant 0 : index
    %1 = vector.load %arg3[%c0_1, %c0_2] : memref<1x160xf32, #tpu.memory_space<vmem>>, vector<1x32xf32>
    tpu.vector_store %arg3[%c0_1, %c0_2], %0 {strides = array<i32>} : memref<1x160xf32, #tpu.memory_space<vmem>>, vector<1x32xf32>,
    %c0_3 = arith.constant 0 : index
    %c0_4 = arith.constant 0 : index
    %2 = vector.load %arg1[%c0_3, %c0_4] : memref<2x32xf32, #tpu.memory_space<vmem>>, vector<1x32xf32>
    %c0_5 = arith.constant 0 : index
    %c32 = arith.constant 32 : index
    %3 = vector.load %arg3[%c0_5, %c32] : memref<1x160xf32, #tpu.memory_space<vmem>>, vector<1x32xf32>
    tpu.vector_store %arg3[%c0_5, %c32], %2 {strides = array<i32>} : memref<1x160xf32, #tpu.memory_space<vmem>>, vector<1x32xf32>,
    %c0_6 = arith.constant 0 : index
    %c0_7 = arith.constant 0 : index
    %4 = vector.load %arg1[%c0_6, %c0_7] : memref<2x32xf32, #tpu.memory_space<vmem>>, vector<1x32xf32>
    %c0_8 = arith.constant 0 : index
    %c64 = arith.constant 64 : index
    %5 = vector.load %arg3[%c0_8, %c64] : memref<1x160xf32, #tpu.memory_space<vmem>>, vector<1x32xf32>
    tpu.vector_store %arg3[%c0_8, %c64], %4 {strides = array<i32>} : memref<1x160xf32, #tpu.memory_space<vmem>>, vector<1x32xf32>,
    %c1 = arith.constant 1 : index
    %c0_9 = arith.constant 0 : index
    %6 = vector.load %arg1[%c1, %c0_9] : memref<2x32xf32, #tpu.memory_space<vmem>>, vector<1x32xf32>
    %c0_10 = arith.constant 0 : index
    %c96 = arith.constant 96 : index
    %7 = vector.load %arg3[%c0_10, %c96] : memref<1x160xf32, #tpu.memory_space<vmem>>, vector<1x32xf32>
    tpu.vector_store %arg3[%c0_10, %c96], %6 {strides = array<i32>} : memref<1x160xf32, #tpu.memory_space<vmem>>, vector<1x32xf32>,
    %c1_11 = arith.constant 1 : index
    %c0_12 = arith.constant 0 : index
    %8 = vector.load %arg1[%c1_11, %c0_12] : memref<2x32xf32, #tpu.memory_space<vmem>>, vector<1x32xf32>
    %c0_13 = arith.constant 0 : index
    %c128 = arith.constant 128 : index
    %9 = vector.load %arg3[%c0_13, %c128] : memref<1x160xf32, #tpu.memory_space<vmem>>, vector<1x32xf32>
    tpu.vector_store %arg3[%c0_13, %c128], %8 {strides = array<i32>} : memref<1x160xf32, #tpu.memory_space<vmem>>, vector<1x32xf32>,
    %c0_14 = arith.constant 0 : index
    %c0_15 = arith.constant 0 : index
    %10 = vector.load %arg3[%c0_14, %c0_15] : memref<1x160xf32, #tpu.memory_space<vmem>>, vector<1x160xf32>
    %11 = vector.shape_cast %10 : vector<1x160xf32> to vector<1x160xf32>
    %12 = vector.broadcast %11 : vector<1x160xf32> to vector<2x160xf32>
    %c0_16 = arith.constant 0 : index
    %c0_17 = arith.constant 0 : index
    %13 = vector.load %arg2[%c0_16, %c0_17] : memref<2x160xf32, #tpu.memory_space<vmem>>, vector<2x160xf32>
    tpu.vector_store %arg2[%c0_16, %c0_17], %12 {strides = array<i32>} : memref<2x160xf32, #tpu.memory_space<vmem>>, vector<2x160xf32>,
    return
  }
  func.func @transform_0(%arg0: i32) -> (i32, i32) {
    %c0_i32 = arith.constant 0 : i32
    %c0_i32_0 = arith.constant 0 : i32
    %c0_i32_1 = arith.constant 0 : i32
    return %c0_i32, %c0_i32_0 : i32, i32
  }
  func.func @transform_1(%arg0: i32) -> (i32, i32) {
    %c0_i32 = arith.constant 0 : i32
    %c0_i32_0 = arith.constant 0 : i32
    return %arg0, %c0_i32 : i32, i32
  }
}

</mosaic_0001>

<llo_original>
// kernel: tpu_custom_call.1
$region0: #{tpu_custom_call.1}
  #allocation0 [shape = 'u32[]', space=smem, size = 0x4, offset = 0x4, fixed_abs, tag = 'smem constant byte address 0x4 - core index']
  #allocation1 [shape = 'u32[72,128]{1,0:T(1,128)}', space=vmem, size = 0x9000, scoped, tag = 'internal scratch']
  #allocation2 [shape = 'f32[1,160]{1,0:T(1,128)}', space=vmem, size = 0x400, scoped, tag = 'scratch operand']
  %s0 = inlined_call_operand.hbm [shape: f32[2,32], index: 0, kind: input, shape index: {}]
  %s1 = inlined_call_operand.hbm [shape: f32[2,160], index: 1, kind: output, shape index: {}]
  %s2 = sld [smem:[#allocation0]]
  $region18: #{tpu_custom_call.1} parent=0
    _
  %s4 = ssub.s32 1, %s2
  %s5 = scalar_select 0, %s4, %s2
  $region1: #{tpu_custom_call.1} parent=0
    #allocation3 [shape = 'u8[1024]{0}', space=vmem, size = 0x400, scoped, tag = 'input window, operand 0, single buffered']
    #allocation4 [shape = 's32[1]{0}', space=sflag, size = 0x4, scoped, tag = 'scoped memory for tpu_custom_call.1']
    #allocation5 [shape = 's32[1]{0}', space=sflag, size = 0x4, scoped, tag = 'scoped memory for tpu_custom_call.1']
    #allocation6 [shape = 'u8[2048]{0}', space=vmem, size = 0x800, scoped, tag = 'output window, operand 0, single buffered']
    %6 = vsyncpa [#allocation4], 0
    %7 = vsyncpa [#allocation5], 0
    // Predicated region
    $region2: #{tpu_custom_call.1} parent=1 // pred_check
      _
    $region3: #{tpu_custom_call.1} parent=1 // pred_check_branch
      %9 = sbr.rel (0) target = $region5
    $region4: #{tpu_custom_call.1} parent=1 // pred_region
      %11 = vsyncadd [#allocation4], 0
      %s13 = sshll.u32 %s0, 4
      %s14 = int_to_ptr.hbm [resolvable:$true] %s13
      %s15 = sshll.u32 [#allocation3], 4
      %s16 = int_to_ptr.vmem [resolvable:$true] %s15
      %18 = dma.hbm_to_vmem [thread:$0]  %s14, 32, %s16, [#allocation4]
    $region5: #{tpu_custom_call.1} parent=1 // pred_fallthru
      _
    // Predicated region
    $region6: #{tpu_custom_call.1} parent=1 // pred_check
      _
    $region7: #{tpu_custom_call.1} parent=1 // pred_check_branch
      %20 = sbr.rel (0) target = $region9
    $region8: #{tpu_custom_call.1} parent=1 // pred_region
      %22 = dma.done [#allocation4], 32
    $region9: #{tpu_custom_call.1} parent=1 // pred_fallthru
      _
    %v23 = vld [vmem:[#allocation3] sm:$0x1]
    %v24 = vlaneseq
    %vm25 = vcmp.ge.s32.totalorder %v24, 0
    %vm26 = vcmp.lt.s32.totalorder %v24, 32
    %vm27 = vmand %vm25, %vm26
    %28 = vst.msk [vmem:[#allocation2] sm:$0x1] %vm27, %v23
    %v29 = vld [vmem:[#allocation3] sm:$0x1]
    %31 = vrot.lane.b32.xlu0 %v29, 32
    %v32 = vpop.permute.xlu0 %31
    %vm34 = vcmp.ge.s32.totalorder %v24, 32
    %vm35 = vcmp.lt.s32.totalorder %v24, 64
    %vm36 = vmand %vm34, %vm35
    %37 = vst.msk [vmem:[#allocation2] sm:$0x1] %vm36, %v32
    %v38 = vld [vmem:[#allocation3] sm:$0x1]
    %40 = vrot.lane.b32.xlu0 %v38, 64
    %v41 = vpop.permute.xlu0 %40
    %vm43 = vcmp.ge.s32.totalorder %v24, 64
    %vm44 = vcmp.lt.s32.totalorder %v24, 96
    %vm45 = vmand %vm43, %vm44
    %46 = vst.msk [vmem:[#allocation2] sm:$0x1] %vm45, %v41
    %v47 = vld [vmem:[#allocation3 + $0x1] sm:$0x1]
    %49 = vrot.lane.b32.xlu0 %v47, 96
    %v50 = vpop.permute.xlu0 %49
    %vm52 = vcmp.ge.s32.totalorder %v24, 96
    %vm53 = vcmp.lt.s32.totalorder %v24, 128
    %vm54 = vmand %vm52, %vm53
    %55 = vst.msk [vmem:[#allocation2] sm:$0x1] %vm54, %v50
    %v56 = vld [vmem:[#allocation3 + $0x1] sm:$0x1]
    %57 = vst.msk [vmem:[#allocation2 + $0x1] sm:$0x1] %vm27, %v56
    %v58 = vld [vmem:[#allocation2] sm:$0x3]
    %v60 = vperm.slane %v58, 0
    %v61 = vperm.slane %v58, 1
    %v62 = vrot.slane %v61, 6
    %vm63 = vcmask 1041408
    %v64 = vsel %vm63, %v60, %v62
    %vm66 = vcmask 257026
    %vm67 = vmor %vm66, %vm63
    %68 = vst.msk [vmem:[#allocation6] sm:$0xf] %vm67, %v64
    // Predicated region
    $region10: #{tpu_custom_call.1} parent=1 // pred_check
      _
    $region11: #{tpu_custom_call.1} parent=1 // pred_check_branch
      %70 = sbr.rel (0) target = $region13
    $region12: #{tpu_custom_call.1} parent=1 // pred_region
      %72 = vsyncadd [#allocation5], 0
      %s74 = sshll.u32 [#allocation6], 4
      %s75 = int_to_ptr.vmem [resolvable:$true] %s74
      %s76 = sshll.u32 %s1, 4
      %s77 = int_to_ptr.hbm [resolvable:$true] %s76
      %79 = dma.vmem_to_hbm [thread:$0]  %s75, 64, %s77, [#allocation5]
    $region13: #{tpu_custom_call.1} parent=1 // pred_fallthru
      _
    // Predicated region
    $region14: #{tpu_custom_call.1} parent=1 // pred_check
      _
    $region15: #{tpu_custom_call.1} parent=1 // pred_check_branch
      %81 = sbr.rel (0) target = $region17
    $region16: #{tpu_custom_call.1} parent=1 // pred_region
      %83 = dma.done [#allocation5], 64
    $region17: #{tpu_custom_call.1} parent=1 // pred_fallthru
      _
    %84 = vsyncpa [#allocation4], 1
    %85 = vsyncpa [#allocation5], 1

</llo_original>
